<compile_context>
chip_gen: v5e
topology: v5e:2x2
jax: 0.10.0
libtpu: 0.0.40
codegen_flags: <defaults>
</compile_context>

<pallas_src>
import jax
import jax.numpy as jnp
from jax.experimental import pallas as pl
from jax.experimental.pallas import tpu as pltpu

FEAT = 128 * 7 * 7        # 6272
K4 = 4 * FEAT             # 25088 concatenated input features
TN = 128                  # output-column tile; 6272 / 128 = 49 grid steps


# ---------------------------------------------------------------------------
# fc = False path: out = w1*m1 + w2*m2 + w3*m3 + w4*m4 (weights broadcast
# over batch).  Total traffic ~450 KB -> single grid-free invocation, no
# reshapes (avoids XLA relayout copies).
# ---------------------------------------------------------------------------
def _weighted_sum_kernel(m1_ref, m2_ref, m3_ref, m4_ref,
                         w1_ref, w2_ref, w3_ref, w4_ref, o_ref):
    o_ref[...] = (w1_ref[...] * m1_ref[...]
                  + w2_ref[...] * m2_ref[...]
                  + w3_ref[...] * m3_ref[...]
                  + w4_ref[...] * m4_ref[...])


def fcube_weighted_sum(m1, m2, m3, m4, w1, w2, w3, w4):
    """Elementwise fusion-cube.  m*: (B, 6272) f32, w*: (1, 6272) f32."""
    B, N = m1.shape
    assert N == FEAT
    return pl.pallas_call(
        _weighted_sum_kernel,
        out_shape=jax.ShapeDtypeStruct((B, N), m1.dtype),
    )(m1, m2, m3, m4, w1, w2, w3, w4)


# ---------------------------------------------------------------------------
# fc = True path: out = concat(m1..m4, 1) @ W + b.
#   x:        (B, 25088) bf16, resident across the grid (~100 KB)
#   w_tiled:  (49, 25088, 128) bf16, block-contiguous; one block streamed/step
#   output:   (B, 6272) f32; bias added once in the wrapper.
# No K grid axis -> no accumulator scratch, no pl.when init/finalize.
# ---------------------------------------------------------------------------
def _linear_kernel(x_ref, w_ref, o_ref):
    o_ref[...] = jnp.dot(x_ref[...], w_ref[...],
                         preferred_element_type=jnp.float32).astype(o_ref.dtype)


def fcube_fc(m1, m2, m3, m4, w_tiled, b):
    """Fully-connected fusion-cube.  w_tiled: (N//TN, 4K, TN) bf16, b: (1, N) f32."""
    B, K = m1.shape
    n_blocks, k4, tn = w_tiled.shape
    N = n_blocks * tn
    assert K == FEAT and k4 == 4 * K and N == FEAT

    # bf16 x bf16 dot (f32 MXU accumulation); casting the tiny acts here avoids
    # promoting the 6.4 MB weight tile back to f32 inside the kernel.
    x = jnp.concatenate([m1, m2, m3, m4], axis=1).astype(w_tiled.dtype)

    itemsize = jnp.dtype(w_tiled.dtype).itemsize
    flops = 2 * B * k4 * N
    bytes_accessed = (n_blocks * k4 * tn * itemsize   # 315 MB bf16 weights (dominant)
                      + B * k4 * itemsize             # activations
                      + B * N * 4)                    # output

    out = pl.pallas_call(
        _linear_kernel,
        out_shape=jax.ShapeDtypeStruct((B, N), jnp.float32),
        grid=(n_blocks,),
        in_specs=[
            # activations resident across all 49 steps
            pl.BlockSpec((B, k4), lambda j: (0, 0)),
            # one contiguous (4K, TN) bf16 weight block per step
            pl.BlockSpec((None, k4, tn), lambda j: (j, 0, 0)),
        ],
        out_specs=pl.BlockSpec((B, tn), lambda j: (0, j)),
        compiler_params=pltpu.CompilerParams(
            dimension_semantics=("parallel",),
            # 6.4 MB bf16 weight block, double-buffered (~13 MB) + small acts.
            # Explicit limit matters on v5e (16 MiB default scoped VMEM) and
            # leaves headroom inside v7x's 64 MiB.
            vmem_limit_bytes=28 << 20),
        cost_estimate=pl.CostEstimate(flops=flops, transcendentals=0,
                                      bytes_accessed=bytes_accessed),
    )(x, w_tiled)
    # Bias added once here (tiny, fused by XLA) instead of 49 per-step 512 B DMAs.
    return out + b


# ---------------------------------------------------------------------------
# FCube wrapper mirroring the PyTorch module
# ---------------------------------------------------------------------------
class FCube:
    def __init__(self, shape, fc, key):
        _, x, y, z = shape
        assert x * y * z == FEAT
        self.fc = fc
        if self.fc:
            k1, k2 = jax.random.split(key)
            bound = (4 * FEAT) ** -0.5  # nn.Linear default init bound
            # f32 "source of truth", stored (in, out) so kernels compute x @ W + b.
            self.f_w = jax.random.uniform(k1, (K4, FEAT), jnp.float32,
                                          -bound, bound)
            self.f_b = jax.random.uniform(k2, (1, FEAT), jnp.float32,
                                          -bound, bound)
            # bf16 weights: halves HBM traffic on this memory-bound path.
            self.f_w_bf16 = self.f_w.astype(jnp.bfloat16)
            # Block-contiguous pre-tiling: block j is W[:, j*TN:(j+1)*TN] laid
            # out contiguously -> one large DMA per grid step.
            self.f_w_tiled = jnp.transpose(
                self.f_w_bf16.reshape(K4, FEAT // TN, TN), (1, 0, 2))
        else:
            ks = jax.random.split(key, 4)
            # torch.randn(x,y,z).uniform_(0,1).view(-1, 6272) -> (1, 6272) U[0,1)
            self.fw = [jax.random.uniform(k, (1, FEAT), jnp.float32) for k in ks]

    def __call__(self, m1_x, m2_x, m3_x, m4_x):
        m1 = m1_x.reshape(-1, FEAT)
        m2 = m2_x.reshape(-1, FEAT)
        m3 = m3_x.reshape(-1, FEAT)
        m4 = m4_x.reshape(-1, FEAT)
        if self.fc:
            return fcube_fc(m1, m2, m3, m4, self.f_w_tiled, self.f_b)
        return fcube_weighted_sum(m1, m2, m3, m4, *self.fw)

    # pure-JAX references for correctness checking
    def reference(self, m1_x, m2_x, m3_x, m4_x, *, quantized=True):
        m1 = m1_x.reshape(-1, FEAT)
        m2 = m2_x.reshape(-1, FEAT)
        m3 = m3_x.reshape(-1, FEAT)
        m4 = m4_x.reshape(-1, FEAT)
        if self.fc:
            x = jnp.concatenate([m1, m2, m3, m4], axis=1)
            if quantized:
                # same bf16 weights/acts as the kernel, f32 accumulation
                return jnp.dot(x.astype(jnp.bfloat16), self.f_w_bf16,
                               preferred_element_type=jnp.float32) + self.f_b
            return x @ self.f_w + self.f_b
        return (self.fw[0] * m1 + self.fw[1] * m2
                + self.fw[2] * m3 + self.fw[3] * m4)


if __name__ == "__main__":
    key = jax.random.PRNGKey(0)
    k_in, k_fc, k_ws = jax.random.split(key, 3)

    B = 2
    shape = (B, 128, 7, 7)  # pre_net feature maps, NCHW
    kin = jax.random.split(k_in, 4)
    m1 = jax.random.normal(kin[0], shape, jnp.float32)
    m2 = jax.random.normal(kin[1], shape, jnp.float32)
    m3 = jax.random.normal(kin[2], shape, jnp.float32)
    m4 = jax.random.normal(kin[3], shape, jnp.float32)

    # fc = False path (elementwise fusion weights)
    fcube_ew = FCube(shape, fc=False, key=k_ws)
    out_ew = jax.block_until_ready(fcube_ew(m1, m2, m3, m4))
    ref_ew = fcube_ew.reference(m1, m2, m3, m4)
    assert out_ew.shape == (B, FEAT)
    assert jnp.allclose(out_ew, ref_ew, atol=1e-5, rtol=1e-5)

    # fc = True path (Linear on concatenated features, bf16 weights)
    fcube_fc_mod = FCube(shape, fc=True, key=k_fc)
    out_fc = jax.block_until_ready(fcube_fc_mod(m1, m2, m3, m4))
    assert out_fc.shape == (B, FEAT)
    # tight check vs a reference using the SAME bf16 weights/acts
    ref_fc_q = fcube_fc_mod.reference(m1, m2, m3, m4, quantized=True)
    assert jnp.allclose(out_fc, ref_fc_q, atol=1e-2, rtol=1e-2)
    # loose check vs the full-f32 Linear semantics (bf16 quantization noise)
    ref_fc_f32 = fcube_fc_mod.reference(m1, m2, m3, m4, quantized=False)
    assert jnp.allclose(out_fc, ref_fc_f32, atol=5e-2, rtol=5e-2)

    print("KERNEL_OK")
</pallas_src>

<mosaic_0001>
module attributes {stable_mosaic.version = 11 : i64} {
  func.func @_weighted_sum_kernel(%arg0: memref<2x6272xf32, #tpu.memory_space<vmem>>, %arg1: memref<2x6272xf32, #tpu.memory_space<vmem>>, %arg2: memref<2x6272xf32, #tpu.memory_space<vmem>>, %arg3: memref<2x6272xf32, #tpu.memory_space<vmem>>, %arg4: memref<1x6272xf32, #tpu.memory_space<vmem>>, %arg5: memref<1x6272xf32, #tpu.memory_space<vmem>>, %arg6: memref<1x6272xf32, #tpu.memory_space<vmem>>, %arg7: memref<1x6272xf32, #tpu.memory_space<vmem>>, %arg8: memref<2x6272xf32, #tpu.memory_space<vmem>>) attributes {dimension_semantics = [], scalar_prefetch = 0 : i64, scratch_operands = 0 : i64, tpu.core_type = #tpu.core_type<tc>} {
    %c0 = arith.constant 0 : index
    %c0_0 = arith.constant 0 : index
    %0 = vector.load %arg4[%c0, %c0_0] : memref<1x6272xf32, #tpu.memory_space<vmem>>, vector<1x6272xf32>
    %c0_1 = arith.constant 0 : index
    %c0_2 = arith.constant 0 : index
    %1 = vector.load %arg0[%c0_1, %c0_2] : memref<2x6272xf32, #tpu.memory_space<vmem>>, vector<2x6272xf32>
    %2 = vector.broadcast %0 : vector<1x6272xf32> to vector<2x6272xf32>
    %3 = arith.mulf %2, %1 : vector<2x6272xf32>
    %c0_3 = arith.constant 0 : index
    %c0_4 = arith.constant 0 : index
    %4 = vector.load %arg5[%c0_3, %c0_4] : memref<1x6272xf32, #tpu.memory_space<vmem>>, vector<1x6272xf32>
    %c0_5 = arith.constant 0 : index
    %c0_6 = arith.constant 0 : index
    %5 = vector.load %arg1[%c0_5, %c0_6] : memref<2x6272xf32, #tpu.memory_space<vmem>>, vector<2x6272xf32>
    %6 = vector.broadcast %4 : vector<1x6272xf32> to vector<2x6272xf32>
    %7 = arith.mulf %6, %5 : vector<2x6272xf32>
    %8 = arith.addf %3, %7 : vector<2x6272xf32>
    %c0_7 = arith.constant 0 : index
    %c0_8 = arith.constant 0 : index
    %9 = vector.load %arg6[%c0_7, %c0_8] : memref<1x6272xf32, #tpu.memory_space<vmem>>, vector<1x6272xf32>
    %c0_9 = arith.constant 0 : index
    %c0_10 = arith.constant 0 : index
    %10 = vector.load %arg2[%c0_9, %c0_10] : memref<2x6272xf32, #tpu.memory_space<vmem>>, vector<2x6272xf32>
    %11 = vector.broadcast %9 : vector<1x6272xf32> to vector<2x6272xf32>
    %12 = arith.mulf %11, %10 : vector<2x6272xf32>
    %13 = arith.addf %8, %12 : vector<2x6272xf32>
    %c0_11 = arith.constant 0 : index
    %c0_12 = arith.constant 0 : index
    %14 = vector.load %arg7[%c0_11, %c0_12] : memref<1x6272xf32, #tpu.memory_space<vmem>>, vector<1x6272xf32>
    %c0_13 = arith.constant 0 : index
    %c0_14 = arith.constant 0 : index
    %15 = vector.load %arg3[%c0_13, %c0_14] : memref<2x6272xf32, #tpu.memory_space<vmem>>, vector<2x6272xf32>
    %16 = vector.broadcast %14 : vector<1x6272xf32> to vector<2x6272xf32>
    %17 = arith.mulf %16, %15 : vector<2x6272xf32>
    %18 = arith.addf %13, %17 : vector<2x6272xf32>
    %c0_15 = arith.constant 0 : index
    %c0_16 = arith.constant 0 : index
    %19 = vector.load %arg8[%c0_15, %c0_16] : memref<2x6272xf32, #tpu.memory_space<vmem>>, vector<2x6272xf32>
    tpu.vector_store %arg8[%c0_15, %c0_16], %18 {strides = array<i32>} : memref<2x6272xf32, #tpu.memory_space<vmem>>, vector<2x6272xf32>,
    return
  }
}

</mosaic_0001>

<llo_original>
// kernel: tpu_custom_call.1
$region0: #{tpu_custom_call.1}
  #allocation0 [shape = 'u32[]', space=smem, size = 0x4, offset = 0x4, fixed_abs, tag = 'smem constant byte address 0x4 - core index']
  #allocation1 [shape = 'u32[72,128]{1,0:T(1,128)}', space=vmem, size = 0x9000, scoped, tag = 'internal scratch']
  %s0 = inlined_call_operand.hbm [shape: f32[2,6272], index: 0, kind: input, shape index: {}]
  %s1 = inlined_call_operand.hbm [shape: f32[2,6272], index: 1, kind: input, shape index: {}]
  %s2 = inlined_call_operand.hbm [shape: f32[2,6272], index: 2, kind: input, shape index: {}]
  %s3 = inlined_call_operand.hbm [shape: f32[2,6272], index: 3, kind: input, shape index: {}]
  %s4 = inlined_call_operand.hbm [shape: f32[1,6272], index: 4, kind: input, shape index: {}]
  %s5 = inlined_call_operand.hbm [shape: f32[1,6272], index: 5, kind: input, shape index: {}]
  %s6 = inlined_call_operand.hbm [shape: f32[1,6272], index: 6, kind: input, shape index: {}]
  %s7 = inlined_call_operand.hbm [shape: f32[1,6272], index: 7, kind: input, shape index: {}]
  %s8 = inlined_call_operand.hbm [shape: f32[2,6272], index: 8, kind: output, shape index: {}]
  %s9 = sld [smem:[#allocation0]]
  $region74: #{tpu_custom_call.1} parent=0
    _
  %s11 = ssub.s32 1, %s9
  %s12 = scalar_select 0, %s11, %s9
  $region1: #{tpu_custom_call.1} parent=0
    #allocation2 [shape = 'u8[50176]{0}', space=vmem, size = 0xc400, scoped, tag = 'input window, operand 0, single buffered']
    #allocation3 [shape = 's32[1]{0}', space=sflag, size = 0x4, scoped, tag = 'scoped memory for tpu_custom_call.1']
    #allocation4 [shape = 's32[1]{0}', space=sflag, size = 0x4, scoped, tag = 'scoped memory for tpu_custom_call.1']
    #allocation5 [shape = 'u8[50176]{0}', space=vmem, size = 0xc400, scoped, tag = 'input window, operand 1, single buffered']
    #allocation6 [shape = 's32[1]{0}', space=sflag, size = 0x4, scoped, tag = 'scoped memory for tpu_custom_call.1']
    #allocation7 [shape = 'u8[50176]{0}', space=vmem, size = 0xc400, scoped, tag = 'input window, operand 2, single buffered']
    #allocation8 [shape = 'u8[50176]{0}', space=vmem, size = 0xc400, scoped, tag = 'input window, operand 3, single buffered']
    #allocation9 [shape = 's32[1]{0}', space=sflag, size = 0x4, scoped, tag = 'scoped memory for tpu_custom_call.1']
    #allocation10 [shape = 'u8[25088]{0}', space=vmem, size = 0x6400, scoped, tag = 'input window, operand 4, single buffered']
    #allocation11 [shape = 'u8[25088]{0}', space=vmem, size = 0x6400, scoped, tag = 'input window, operand 5, single buffered']
    #allocation12 [shape = 's32[1]{0}', space=sflag, size = 0x4, scoped, tag = 'scoped memory for tpu_custom_call.1']
    #allocation13 [shape = 'u8[25088]{0}', space=vmem, size = 0x6400, scoped, tag = 'input window, operand 6, single buffered']
    #allocation14 [shape = 'u8[25088]{0}', space=vmem, size = 0x6400, scoped, tag = 'input window, operand 7, single buffered']
    #allocation15 [shape = 's32[1]{0}', space=sflag, size = 0x4, scoped, tag = 'scoped memory for tpu_custom_call.1']
    #allocation16 [shape = 'u8[50176]{0}', space=vmem, size = 0xc400, scoped, tag = 'output window, operand 0, single buffered']
    %13 = vsyncpa [#allocation3], 0
    %14 = vsyncpa [#allocation6], 0
    %15 = vsyncpa [#allocation9], 0
    %16 = vsyncpa [#allocation12], 0
    %17 = vsyncpa [#allocation15], 0
    %18 = vsyncpa [#allocation4], 0
    // Predicated region
    $region2: #{tpu_custom_call.1} parent=1 // pred_check
      _
    $region3: #{tpu_custom_call.1} parent=1 // pred_check_branch
      %20 = sbr.rel (0) target = $region5
    $region4: #{tpu_custom_call.1} parent=1 // pred_region
      %22 = vsyncadd [#allocation3], 0
      %s24 = sshll.u32 %s0, 4
      %s25 = int_to_ptr.hbm [resolvable:$true] %s24
      %s26 = sshll.u32 [#allocation2], 4
      %s27 = int_to_ptr.vmem [resolvable:$true] %s26
      %29 = dma.hbm_to_vmem [thread:$0]  %s25, 1568, %s27, [#allocation3]
    $region5: #{tpu_custom_call.1} parent=1 // pred_fallthru
      _
    // Predicated region
    $region6: #{tpu_custom_call.1} parent=1 // pred_check
      _
    $region7: #{tpu_custom_call.1} parent=1 // pred_check_branch
      %31 = sbr.rel (0) target = $region9
    $region8: #{tpu_custom_call.1} parent=1 // pred_region
      %33 = vsyncadd [#allocation6], 0
      %s35 = sshll.u32 %s1, 4
      %s36 = int_to_ptr.hbm [resolvable:$true] %s35
      %s37 = sshll.u32 [#allocation5], 4
      %s38 = int_to_ptr.vmem [resolvable:$true] %s37
      %40 = dma.hbm_to_vmem [thread:$0]  %s36, 1568, %s38, [#allocation6]
    $region9: #{tpu_custom_call.1} parent=1 // pred_fallthru
      _
    // Predicated region
    $region10: #{tpu_custom_call.1} parent=1 // pred_check
      _
    $region11: #{tpu_custom_call.1} parent=1 // pred_check_branch
      %42 = sbr.rel (0) target = $region13
    $region12: #{tpu_custom_call.1} parent=1 // pred_region
      %44 = vsyncadd [#allocation6], 0
      %s46 = sshll.u32 %s2, 4
      %s47 = int_to_ptr.hbm [resolvable:$true] %s46
      %s48 = sshll.u32 [#allocation7], 4
      %s49 = int_to_ptr.vmem [resolvable:$true] %s48
      %51 = dma.hbm_to_vmem [thread:$0]  %s47, 1568, %s49, [#allocation6]
    $region13: #{tpu_custom_call.1} parent=1 // pred_fallthru
      _
    // Predicated region
    $region14: #{tpu_custom_call.1} parent=1 // pred_check
      _
    $region15: #{tpu_custom_call.1} parent=1 // pred_check_branch
      %53 = sbr.rel (0) target = $region17
    $region16: #{tpu_custom_call.1} parent=1 // pred_region
      %55 = vsyncadd [#allocation9], 0
      %s57 = sshll.u32 %s3, 4
      %s58 = int_to_ptr.hbm [resolvable:$true] %s57
      %s59 = sshll.u32 [#allocation8], 4
      %s60 = int_to_ptr.vmem [resolvable:$true] %s59
      %62 = dma.hbm_to_vmem [thread:$0]  %s58, 1568, %s60, [#allocation9]
    $region17: #{tpu_custom_call.1} parent=1 // pred_fallthru
      _
    // Predicated region
    $region18: #{tpu_custom_call.1} parent=1 // pred_check
      _
    $region19: #{tpu_custom_call.1} parent=1 // pred_check_branch
      %64 = sbr.rel (0) target = $region21
    $region20: #{tpu_custom_call.1} parent=1 // pred_region
      %66 = vsyncadd [#allocation9], 0
      %s68 = sshll.u32 %s4, 4
      %s69 = int_to_ptr.hbm [resolvable:$true] %s68
      %s70 = sshll.u32 [#allocation10], 4
      %s71 = int_to_ptr.vmem [resolvable:$true] %s70
      %73 = dma.hbm_to_vmem [thread:$0]  %s69, 784, %s71, [#allocation9]
    $region21: #{tpu_custom_call.1} parent=1 // pred_fallthru
      _
    // Predicated region
    $region22: #{tpu_custom_call.1} parent=1 // pred_check
      _
    $region23: #{tpu_custom_call.1} parent=1 // pred_check_branch
      %75 = sbr.rel (0) target = $region25
    $region24: #{tpu_custom_call.1} parent=1 // pred_region
      %77 = vsyncadd [#allocation12], 0
      %s79 = sshll.u32 %s5, 4
      %s80 = int_to_ptr.hbm [resolvable:$true] %s79
      %s81 = sshll.u32 [#allocation11], 4
      %s82 = int_to_ptr.vmem [resolvable:$true] %s81
      %84 = dma.hbm_to_vmem [thread:$0]  %s80, 784, %s82, [#allocation12]
    $region25: #{tpu_custom_call.1} parent=1 // pred_fallthru
      _
    // Predicated region
    $region26: #{tpu_custom_call.1} parent=1 // pred_check
      _
    $region27: #{tpu_custom_call.1} parent=1 // pred_check_branch
      %86 = sbr.rel (0) target = $region29
    $region28: #{tpu_custom_call.1} parent=1 // pred_region
      %88 = vsyncadd [#allocation12], 0
      %s90 = sshll.u32 %s6, 4
      %s91 = int_to_ptr.hbm [resolvable:$true] %s90
      %s92 = sshll.u32 [#allocation13], 4
      %s93 = int_to_ptr.vmem [resolvable:$true] %s92
      %95 = dma.hbm_to_vmem [thread:$0]  %s91, 784, %s93, [#allocation12]
    $region29: #{tpu_custom_call.1} parent=1 // pred_fallthru
      _
    // Predicated region
    $region30: #{tpu_custom_call.1} parent=1 // pred_check
      _
    $region31: #{tpu_custom_call.1} parent=1 // pred_check_branch
      %97 = sbr.rel (0) target = $region33
    $region32: #{tpu_custom_call.1} parent=1 // pred_region
      %99 = vsyncadd [#allocation15], 0
      %s101 = sshll.u32 %s7, 4
      %s102 = int_to_ptr.hbm [resolvable:$true] %s101
      %s103 = sshll.u32 [#allocation14], 4
      %s104 = int_to_ptr.vmem [resolvable:$true] %s103
      %106 = dma.hbm_to_vmem [thread:$0]  %s102, 784, %s104, [#allocation15]
    $region33: #{tpu_custom_call.1} parent=1 // pred_fallthru
      _
    // Predicated region
    $region34: #{tpu_custom_call.1} parent=1 // pred_check
      _
    $region35: #{tpu_custom_call.1} parent=1 // pred_check_branch
      %108 = sbr.rel (0) target = $region37
    $region36: #{tpu_custom_call.1} parent=1 // pred_region
      %110 = dma.done [#allocation3], 1568
    $region37: #{tpu_custom_call.1} parent=1 // pred_fallthru
      _
    // Predicated region
    $region38: #{tpu_custom_call.1} parent=1 // pred_check
      _
    $region39: #{tpu_custom_call.1} parent=1 // pred_check_branch
      %112 = sbr.rel (0) target = $region41
    $region40: #{tpu_custom_call.1} parent=1 // pred_region
      %114 = dma.done [#allocation6], 1568
    $region41: #{tpu_custom_call.1} parent=1 // pred_fallthru
      _
    // Predicated region
    $region42: #{tpu_custom_call.1} parent=1 // pred_check
      _
    $region43: #{tpu_custom_call.1} parent=1 // pred_check_branch
      %116 = sbr.rel (0) target = $region45
    $region44: #{tpu_custom_call.1} parent=1 // pred_region
      %118 = dma.done [#allocation6], 1568
    $region45: #{tpu_custom_call.1} parent=1 // pred_fallthru
      _
    // Predicated region
    $region46: #{tpu_custom_call.1} parent=1 // pred_check
      _
    $region47: #{tpu_custom_call.1} parent=1 // pred_check_branch
      %120 = sbr.rel (0) target = $region49
    $region48: #{tpu_custom_call.1} parent=1 // pred_region
      %122 = dma.done [#allocation9], 1568
    $region49: #{tpu_custom_call.1} parent=1 // pred_fallthru
      _
    // Predicated region
    $region50: #{tpu_custom_call.1} parent=1 // pred_check
      _
    $region51: #{tpu_custom_call.1} parent=1 // pred_check_branch
      %124 = sbr.rel (0) target = $region53
    $region52: #{tpu_custom_call.1} parent=1 // pred_region
      %126 = dma.done [#allocation9], 784
    $region53: #{tpu_custom_call.1} parent=1 // pred_fallthru
      _
    // Predicated region
    $region54: #{tpu_custom_call.1} parent=1 // pred_check
      _
    $region55: #{tpu_custom_call.1} parent=1 // pred_check_branch
      %128 = sbr.rel (0) target = $region57
    $region56: #{tpu_custom_call.1} parent=1 // pred_region
      %130 = dma.done [#allocation12], 784
    $region57: #{tpu_custom_call.1} parent=1 // pred_fallthru
      _
    // Predicated region
    $region58: #{tpu_custom_call.1} parent=1 // pred_check
      _
    $region59: #{tpu_custom_call.1} parent=1 // pred_check_branch
      %132 = sbr.rel (0) target = $region61
    $region60: #{tpu_custom_call.1} parent=1 // pred_region
      %134 = dma.done [#allocation12], 784
    $region61: #{tpu_custom_call.1} parent=1 // pred_fallthru
      _
    // Predicated region
    $region62: #{tpu_custom_call.1} parent=1 // pred_check
      _
    $region63: #{tpu_custom_call.1} parent=1 // pred_check_branch
      %136 = sbr.rel (0) target = $region65
    $region64: #{tpu_custom_call.1} parent=1 // pred_region
      %138 = dma.done [#allocation15], 784
    $region65: #{tpu_custom_call.1} parent=1 // pred_fallthru
      _
    %v139 = vld [vmem:[#allocation10] sm:$0xff]
    %v140 = vld [vmem:[#allocation10 + $0x8] sm:$0xff]
    %v141 = vld [vmem:[#allocation10 + $0x10] sm:$0xff]
    %v142 = vld [vmem:[#allocation10 + $0x18] sm:$0xff]
    %v143 = vld [vmem:[#allocation10 + $0x20] sm:$0xff]
    %v144 = vld [vmem:[#allocation10 + $0x28] sm:$0xff]
    %v145 = vld [vmem:[#allocation10 + $0x30] sm:$0x1]
    %v146 = vld [vmem:[#allocation2] sm:$0xff]
    %v147 = vld [vmem:[#allocation2 + $0x8] sm:$0xff]
    %v148 = vld [vmem:[#allocation2 + $0x10] sm:$0xff]
    %v149 = vld [vmem:[#allocation2 + $0x18] sm:$0xff]
    %v150 = vld [vmem:[#allocation2 + $0x20] sm:$0xff]
    %v151 = vld [vmem:[#allocation2 + $0x28] sm:$0xff]
    %v152 = vld [vmem:[#allocation2 + $0x30] sm:$0xff]
    %v153 = vld [vmem:[#allocation2 + $0x38] sm:$0xff]
    %v154 = vld [vmem:[#allocation2 + $0x40] sm:$0xff]
    %v155 = vld [vmem:[#allocation2 + $0x48] sm:$0xff]
    %v156 = vld [vmem:[#allocation2 + $0x50] sm:$0xff]
    %v157 = vld [vmem:[#allocation2 + $0x58] sm:$0xff]
    %v158 = vld [vmem:[#allocation2 + $0x60] sm:$0x3]
    %v166 = vperm.slane %v139, 0
    %v167 = vperm.slane %v139, 1
    %v168 = vperm.slane %v139, 2
    %v169 = vperm.slane %v139, 3
    %v170 = vperm.slane %v139, 4
    %v171 = vperm.slane %v139, 5
    %v172 = vperm.slane %v139, 6
    %v173 = vperm.slane %v139, 7
    %v174 = vperm.slane %v140, 0
    %v175 = vperm.slane %v140, 1
    %v176 = vperm.slane %v140, 2
    %v177 = vperm.slane %v140, 3
    %v178 = vperm.slane %v140, 4
    %v179 = vperm.slane %v140, 5
    %v180 = vperm.slane %v140, 6
    %v181 = vperm.slane %v140, 7
    %v182 = vperm.slane %v141, 0
    %v183 = vperm.slane %v141, 1
    %v184 = vperm.slane %v141, 2
    %v185 = vperm.slane %v141, 3
    %v186 = vperm.slane %v141, 4
    %v187 = vperm.slane %v141, 5
    %v188 = vperm.slane %v141, 6
    %v189 = vperm.slane %v141, 7
    %v190 = vperm.slane %v142, 0
    %v191 = vperm.slane %v142, 1
    %v192 = vperm.slane %v142, 2
    %v193 = vperm.slane %v142, 3
    %v194 = vperm.slane %v142, 4
    %v195 = vperm.slane %v142, 5
    %v196 = vperm.slane %v142, 6
    %v197 = vperm.slane %v142, 7
    %v198 = vperm.slane %v143, 0
    %v199 = vperm.slane %v143, 1
    %v200 = vperm.slane %v143, 2
    %v201 = vperm.slane %v143, 3
    %v202 = vperm.slane %v143, 4
    %v203 = vperm.slane %v143, 5
    %v204 = vperm.slane %v143, 6
    %v205 = vperm.slane %v143, 7
    %v206 = vperm.slane %v144, 0
    %v207 = vperm.slane %v144, 1
    %v208 = vperm.slane %v144, 2
    %v209 = vperm.slane %v144, 3
    %v210 = vperm.slane %v144, 4
    %v211 = vperm.slane %v144, 5
    %v212 = vperm.slane %v144, 6
    %v213 = vperm.slane %v144, 7
    %v214 = vperm.slane %v145, 0
    %277 = vst [vmem:[#allocation1] ss:$4 sm:$0xff] %v146
    %s278 = scalar_lea.vmem [#allocation1], 32
    %279 = vst [vmem:[%s278] ss:$4 sm:$0xff] %v147
    %v280 = vld.sshfl [vmem:[#allocation1] sm:$0xff pattern:$0x73625140]
    %v281 = vld.sshfl [vmem:[#allocation1 + $0x8] sm:$0xff pattern:$0x73625140]
    %v282 = vld.sshfl [vmem:[#allocation1 + $0x10] sm:$0xff pattern:$0x73625140]
    %v283 = vld.sshfl [vmem:[#allocation1 + $0x18] sm:$0xff pattern:$0x73625140]
    %v284 = vld.sshfl [vmem:[#allocation1 + $0x20] sm:$0xff pattern:$0x73625140]
    %v285 = vld.sshfl [vmem:[#allocation1 + $0x28] sm:$0xff pattern:$0x73625140]
    %v286 = vld.sshfl [vmem:[#allocation1 + $0x30] sm:$0xff pattern:$0x73625140]
    %v287 = vld.sshfl [vmem:[#allocation1 + $0x38] sm:$0xff pattern:$0x73625140]
    %288 = vst [vmem:[#allocation1] ss:$4 sm:$0xff] %v148
    %289 = vst [vmem:[%s278] ss:$4 sm:$0xff] %v149
    %v290 = vld.sshfl [vmem:[#allocation1] sm:$0xff pattern:$0x73625140]
    %v291 = vld.sshfl [vmem:[#allocation1 + $0x8] sm:$0xff pattern:$0x73625140]
    %v292 = vld.sshfl [vmem:[#allocation1 + $0x10] sm:$0xff pattern:$0x73625140]
    %v293 = vld.sshfl [vmem:[#allocation1 + $0x18] sm:$0xff pattern:$0x73625140]
    %v294 = vld.sshfl [vmem:[#allocation1 + $0x20] sm:$0xff pattern:$0x73625140]
    %v295 = vld.sshfl [vmem:[#allocation1 + $0x28] sm:$0xff pattern:$0x73625140]
    %v296 = vld.sshfl [vmem:[#allocation1 + $0x30] sm:$0xff pattern:$0x73625140]
    %v297 = vld.sshfl [vmem:[#allocation1 + $0x38] sm:$0xff pattern:$0x73625140]
    %298 = vst [vmem:[#allocation1] ss:$4 sm:$0xff] %v150
    %299 = vst [vmem:[%s278] ss:$4 sm:$0xff] %v151
    %v300 = vld.sshfl [vmem:[#allocation1] sm:$0xff pattern:$0x73625140]
    %v301 = vld.sshfl [vmem:[#allocation1 + $0x8] sm:$0xff pattern:$0x73625140]
    %v302 = vld.sshfl [vmem:[#allocation1 + $0x10] sm:$0xff pattern:$0x73625140]
    %v303 = vld.sshfl [vmem:[#allocation1 + $0x18] sm:$0xff pattern:$0x73625140]
    %v304 = vld.sshfl [vmem:[#allocation1 + $0x20] sm:$0xff pattern:$0x73625140]
    %v305 = vld.sshfl [vmem:[#allocation1 + $0x28] sm:$0xff pattern:$0x73625140]
    %v306 = vld.sshfl [vmem:[#allocation1 + $0x30] sm:$0xff pattern:$0x73625140]
    %v307 = vld.sshfl [vmem:[#allocation1 + $0x38] sm:$0xff pattern:$0x73625140]
    %308 = vst [vmem:[#allocation1] ss:$4 sm:$0xff] %v152
    %309 = vst [vmem:[%s278] ss:$4 sm:$0xff] %v153
    %v310 = vld.sshfl [vmem:[#allocation1] sm:$0xff pattern:$0x73625140]
    %v311 = vld.sshfl [vmem:[#allocation1 + $0x8] sm:$0xff pattern:$0x73625140]
    %v312 = vld.sshfl [vmem:[#allocation1 + $0x10] sm:$0xff pattern:$0x73625140]
    %v313 = vld.sshfl [vmem:[#allocation1 + $0x18] sm:$0xff pattern:$0x73625140]
    %v314 = vld.sshfl [vmem:[#allocation1 + $0x20] sm:$0xff pattern:$0x73625140]
    %v315 = vld.sshfl [vmem:[#allocation1 + $0x28] sm:$0xff pattern:$0x73625140]
    %v316 = vld.sshfl [vmem:[#allocation1 + $0x30] sm:$0xff pattern:$0x73625140]
    %v317 = vld.sshfl [vmem:[#allocation1 + $0x38] sm:$0xff pattern:$0x73625140]
    %318 = vst [vmem:[#allocation1] ss:$4 sm:$0xff] %v154
    %319 = vst [vmem:[%s278] ss:$4 sm:$0xff] %v155
    %v320 = vld.sshfl [vmem:[#allocation1] sm:$0xff pattern:$0x73625140]
    %v321 = vld.sshfl [vmem:[#allocation1 + $0x8] sm:$0xff pattern:$0x73625140]
    %v322 = vld.sshfl [vmem:[#allocation1 + $0x10] sm:$0xff pattern:$0x73625140]
    %v323 = vld.sshfl [vmem:[#allocation1 + $0x18] sm:$0xff pattern:$0x73625140]
    %v324 = vld.sshfl [vmem:[#allocation1 + $0x20] sm:$0xff pattern:$0x73625140]
    %v325 = vld.sshfl [vmem:[#allocation1 + $0x28] sm:$0xff pattern:$0x73625140]
    %v326 = vld.sshfl [vmem:[#allocation1 + $0x30] sm:$0xff pattern:$0x73625140]
    %v327 = vld.sshfl [vmem:[#allocation1 + $0x38] sm:$0xff pattern:$0x73625140]
    %328 = vst [vmem:[#allocation1] ss:$4 sm:$0xff] %v156
    %329 = vst [vmem:[%s278] ss:$4 sm:$0xff] %v157
    %v330 = vld.sshfl [vmem:[#allocation1] sm:$0xff pattern:$0x73625140]
    %v331 = vld.sshfl [vmem:[#allocation1 + $0x8] sm:$0xff pattern:$0x73625140]
    %v332 = vld.sshfl [vmem:[#allocation1 + $0x10] sm:$0xff pattern:$0x73625140]
    %v333 = vld.sshfl [vmem:[#allocation1 + $0x18] sm:$0xff pattern:$0x73625140]
    %v334 = vld.sshfl [vmem:[#allocation1 + $0x20] sm:$0xff pattern:$0x73625140]
    %v335 = vld.sshfl [vmem:[#allocation1 + $0x28] sm:$0xff pattern:$0x73625140]
    %v336 = vld.sshfl [vmem:[#allocation1 + $0x30] sm:$0xff pattern:$0x73625140]
    %v337 = vld.sshfl [vmem:[#allocation1 + $0x38] sm:$0xff pattern:$0x73625140]
    %338 = vst [vmem:[#allocation1] ss:$4 sm:$0xff] %v158
    %v339 = vld.sshfl [vmem:[#allocation1] sm:$0xff pattern:$0x73625140]
    %v389 = vmul.f32 %v166, %v280
    %v390 = vmul.f32 %v167, %v281
    %v391 = vmul.f32 %v168, %v282
    %v392 = vmul.f32 %v169, %v283
    %v393 = vmul.f32 %v170, %v284
    %v394 = vmul.f32 %v171, %v285
    %v395 = vmul.f32 %v172, %v286
    %v396 = vmul.f32 %v173, %v287
    %v397 = vmul.f32 %v174, %v290
    %v398 = vmul.f32 %v175, %v291
    %v399 = vmul.f32 %v176, %v292
    %v400 = vmul.f32 %v177, %v293
    %v401 = vmul.f32 %v178, %v294
    %v402 = vmul.f32 %v179, %v295
    %v403 = vmul.f32 %v180, %v296
    %v404 = vmul.f32 %v181, %v297
    %v405 = vmul.f32 %v182, %v300
    %v406 = vmul.f32 %v183, %v301
    %v407 = vmul.f32 %v184, %v302
    %v408 = vmul.f32 %v185, %v303
    %v409 = vmul.f32 %v186, %v304
    %v410 = vmul.f32 %v187, %v305
    %v411 = vmul.f32 %v188, %v306
    %v412 = vmul.f32 %v189, %v307
    %v413 = vmul.f32 %v190, %v310
    %v414 = vmul.f32 %v191, %v311
    %v415 = vmul.f32 %v192, %v312
    %v416 = vmul.f32 %v193, %v313
    %v417 = vmul.f32 %v194, %v314
    %v418 = vmul.f32 %v195, %v315
    %v419 = vmul.f32 %v196, %v316
    %v420 = vmul.f32 %v197, %v317
    %v421 = vmul.f32 %v198, %v320
    %v422 = vmul.f32 %v199, %v321
    %v423 = vmul.f32 %v200, %v322
    %v424 = vmul.f32 %v201, %v323
    %v425 = vmul.f32 %v202, %v324
    %v426 = vmul.f32 %v203, %v325
    %v427 = vmul.f32 %v204, %v326
    %v428 = vmul.f32 %v205, %v327
    %v429 = vmul.f32 %v206, %v330
    %v430 = vmul.f32 %v207, %v331
    %v431 = vmul.f32 %v208, %v332
    %v432 = vmul.f32 %v209, %v333
    %v433 = vmul.f32 %v210, %v334
    %v434 = vmul.f32 %v211, %v335
    %v435 = vmul.f32 %v212, %v336
    %v436 = vmul.f32 %v213, %v337
    %v437 = vmul.f32 %v214, %v339
    %v438 = vld [vmem:[#allocation11] sm:$0xff]
    %v439 = vld [vmem:[#allocation11 + $0x8] sm:$0xff]
    %v440 = vld [vmem:[#allocation11 + $0x10] sm:$0xff]
    %v441 = vld [vmem:[#allocation11 + $0x18] sm:$0xff]
    %v442 = vld [vmem:[#allocation11 + $0x20] sm:$0xff]
    %v443 = vld [vmem:[#allocation11 + $0x28] sm:$0xff]
    %v444 = vld [vmem:[#allocation11 + $0x30] sm:$0x1]
    %v445 = vld [vmem:[#allocation5] sm:$0xff]
    %v446 = vld [vmem:[#allocation5 + $0x8] sm:$0xff]
    %v447 = vld [vmem:[#allocation5 + $0x10] sm:$0xff]
    %v448 = vld [vmem:[#allocation5 + $0x18] sm:$0xff]
    %v449 = vld [vmem:[#allocation5 + $0x20] sm:$0xff]
    %v450 = vld [vmem:[#allocation5 + $0x28] sm:$0xff]
    %v451 = vld [vmem:[#allocation5 + $0x30] sm:$0xff]
    %v452 = vld [vmem:[#allocation5 + $0x38] sm:$0xff]
    %v453 = vld [vmem:[#allocation5 + $0x40] sm:$0xff]
    %v454 = vld [vmem:[#allocation5 + $0x48] sm:$0xff]
    %v455 = vld [vmem:[#allocation5 + $0x50] sm:$0xff]
    %v456 = vld [vmem:[#allocation5 + $0x58] sm:$0xff]
    %v457 = vld [vmem:[#allocation5 + $0x60] sm:$0x3]
    %v465 = vperm.slane %v438, 0
    %v466 = vperm.slane %v438, 1
    %v467 = vperm.slane %v438, 2
    %v468 = vperm.slane %v438, 3
    %v469 = vperm.slane %v438, 4
    %v470 = vperm.slane %v438, 5
    %v471 = vperm.slane %v438, 6
    %v472 = vperm.slane %v438, 7
    %v473 = vperm.slane %v439, 0
    %v474 = vperm.slane %v439, 1
    %v475 = vperm.slane %v439, 2
    %v476 = vperm.slane %v439, 3
    %v477 = vperm.slane %v439, 4
    %v478 = vperm.slane %v439, 5
    %v479 = vperm.slane %v439, 6
    %v480 = vperm.slane %v439, 7
    %v481 = vperm.slane %v440, 0
    %v482 = vperm.slane %v440, 1
    %v483 = vperm.slane %v440, 2
    %v484 = vperm.slane %v440, 3
    %v485 = vperm.slane %v440, 4
    %v486 = vperm.slane %v440, 5
    %v487 = vperm.slane %v440, 6
    %v488 = vperm.slane %v440, 7
    %v489 = vperm.slane %v441, 0
    %v490 = vperm.slane %v441, 1
    %v491 = vperm.slane %v441, 2
    %v492 = vperm.slane %v441, 3
    %v493 = vperm.slane %v441, 4
    %v494 = vperm.slane %v441, 5
    %v495 = vperm.slane %v441, 6
    %v496 = vperm.slane %v441, 7
    %v497 = vperm.slane %v442, 0
    %v498 = vperm.slane %v442, 1
    %v499 = vperm.slane %v442, 2
    %v500 = vperm.slane %v442, 3
    %v501 = vperm.slane %v442, 4
    %v502 = vperm.slane %v442, 5
    %v503 = vperm.slane %v442, 6
    %v504 = vperm.slane %v442, 7
    %v505 = vperm.slane %v443, 0
    %v506 = vperm.slane %v443, 1
    %v507 = vperm.slane %v443, 2
    %v508 = vperm.slane %v443, 3
    %v509 = vperm.slane %v443, 4
    %v510 = vperm.slane %v443, 5
    %v511 = vperm.slane %v443, 6
    %v512 = vperm.slane %v443, 7
    %v513 = vperm.slane %v444, 0
    %576 = vst [vmem:[#allocation1] ss:$4 sm:$0xff] %v445
    %s577 = scalar_lea.vmem [#allocation1], 32
    %578 = vst [vmem:[%s577] ss:$4 sm:$0xff] %v446
    %v579 = vld.sshfl [vmem:[#allocation1] sm:$0xff pattern:$0x73625140]
    %v580 = vld.sshfl [vmem:[#allocation1 + $0x8] sm:$0xff pattern:$0x73625140]
    %v581 = vld.sshfl [vmem:[#allocation1 + $0x10] sm:$0xff pattern:$0x73625140]
    %v582 = vld.sshfl [vmem:[#allocation1 + $0x18] sm:$0xff pattern:$0x73625140]
    %v583 = vld.sshfl [vmem:[#allocation1 + $0x20] sm:$0xff pattern:$0x73625140]
    %v584 = vld.sshfl [vmem:[#allocation1 + $0x28] sm:$0xff pattern:$0x73625140]
    %v585 = vld.sshfl [vmem:[#allocation1 + $0x30] sm:$0xff pattern:$0x73625140]
    %v586 = vld.sshfl [vmem:[#allocation1 + $0x38] sm:$0xff pattern:$0x73625140]
    %587 = vst [vmem:[#allocation1] ss:$4 sm:$0xff] %v447
    %588 = vst [vmem:[%s577] ss:$4 sm:$0xff] %v448
    %v589 = vld.sshfl [vmem:[#allocation1] sm:$0xff pattern:$0x73625140]
    %v590 = vld.sshfl [vmem:[#allocation1 + $0x8] sm:$0xff pattern:$0x73625140]
    %v591 = vld.sshfl [vmem:[#allocation1 + $0x10] sm:$0xff pattern:$0x73625140]
    %v592 = vld.sshfl [vmem:[#allocation1 + $0x18] sm:$0xff pattern:$0x73625140]
    %v593 = vld.sshfl [vmem:[#allocation1 + $0x20] sm:$0xff pattern:$0x73625140]
    %v594 = vld.sshfl [vmem:[#allocation1 + $0x28] sm:$0xff pattern:$0x73625140]
    %v595 = vld.sshfl [vmem:[#allocation1 + $0x30] sm:$0xff pattern:$0x73625140]
    %v596 = vld.sshfl [vmem:[#allocation1 + $0x38] sm:$0xff pattern:$0x73625140]
    %597 = vst [vmem:[#allocation1] ss:$4 sm:$0xff] %v449
    %598 = vst [vmem:[%s577] ss:$4 sm:$0xff] %v450
    %v599 = vld.sshfl [vmem:[#allocation1] sm:$0xff pattern:$0x73625140]
    %v600 = vld.sshfl [vmem:[#allocation1 + $0x8] sm:$0xff pattern:$0x73625140]
    %v601 = vld.sshfl [vmem:[#allocation1 + $0x10] sm:$0xff pattern:$0x73625140]
    %v602 = vld.sshfl [vmem:[#allocation1 + $0x18] sm:$0xff pattern:$0x73625140]
    %v603 = vld.sshfl [vmem:[#allocation1 + $0x20] sm:$0xff pattern:$0x73625140]
    %v604 = vld.sshfl [vmem:[#allocation1 + $0x28] sm:$0xff pattern:$0x73625140]
    %v605 = vld.sshfl [vmem:[#allocation1 + $0x30] sm:$0xff pattern:$0x73625140]
    %v606 = vld.sshfl [vmem:[#allocation1 + $0x38] sm:$0xff pattern:$0x73625140]
    %607 = vst [vmem:[#allocation1] ss:$4 sm:$0xff] %v451
    %608 = vst [vmem:[%s577] ss:$4 sm:$0xff] %v452
    %v609 = vld.sshfl [vmem:[#allocation1] sm:$0xff pattern:$0x73625140]
    %v610 = vld.sshfl [vmem:[#allocation1 + $0x8] sm:$0xff pattern:$0x73625140]
    %v611 = vld.sshfl [vmem:[#allocation1 + $0x10] sm:$0xff pattern:$0x73625140]
    %v612 = vld.sshfl [vmem:[#allocation1 + $0x18] sm:$0xff pattern:$0x73625140]
    %v613 = vld.sshfl [vmem:[#allocation1 + $0x20] sm:$0xff pattern:$0x73625140]
    %v614 = vld.sshfl [vmem:[#allocation1 + $0x28] sm:$0xff pattern:$0x73625140]
    %v615 = vld.sshfl [vmem:[#allocation1 + $0x30] sm:$0xff pattern:$0x73625140]
    %v616 = vld.sshfl [vmem:[#allocation1 + $0x38] sm:$0xff pattern:$0x73625140]
    %617 = vst [vmem:[#allocation1] ss:$4 sm:$0xff] %v453
    %618 = vst [vmem:[%s577] ss:$4 sm:$0xff] %v454
    %v619 = vld.sshfl [vmem:[#allocation1] sm:$0xff pattern:$0x73625140]
    %v620 = vld.sshfl [vmem:[#allocation1 + $0x8] sm:$0xff pattern:$0x73625140]
    %v621 = vld.sshfl [vmem:[#allocation1 + $0x10] sm:$0xff pattern:$0x73625140]
    %v622 = vld.sshfl [vmem:[#allocation1 + $0x18] sm:$0xff pattern:$0x73625140]
    %v623 = vld.sshfl [vmem:[#allocation1 + $0x20] sm:$0xff pattern:$0x73625140]
    %v624 = vld.sshfl [vmem:[#allocation1 + $0x28] sm:$0xff pattern:$0x73625140]
    %v625 = vld.sshfl [vmem:[#allocation1 + $0x30] sm:$0xff pattern:$0x73625140]
    %v626 = vld.sshfl [vmem:[#allocation1 + $0x38] sm:$0xff pattern:$0x73625140]
    %627 = vst [vmem:[#allocation1] ss:$4 sm:$0xff] %v455
    %628 = vst [vmem:[%s577] ss:$4 sm:$0xff] %v456
    %v629 = vld.sshfl [vmem:[#allocation1] sm:$0xff pattern:$0x73625140]
    %v630 = vld.sshfl [vmem:[#allocation1 + $0x8] sm:$0xff pattern:$0x73625140]
    %v631 = vld.sshfl [vmem:[#allocation1 + $0x10] sm:$0xff pattern:$0x73625140]
    %v632 = vld.sshfl [vmem:[#allocation1 + $0x18] sm:$0xff pattern:$0x73625140]
    %v633 = vld.sshfl [vmem:[#allocation1 + $0x20] sm:$0xff pattern:$0x73625140]
    %v634 = vld.sshfl [vmem:[#allocation1 + $0x28] sm:$0xff pattern:$0x73625140]
    %v635 = vld.sshfl [vmem:[#allocation1 + $0x30] sm:$0xff pattern:$0x73625140]
    %v636 = vld.sshfl [vmem:[#allocation1 + $0x38] sm:$0xff pattern:$0x73625140]
    %637 = vst [vmem:[#allocation1] ss:$4 sm:$0xff] %v457
    %v638 = vld.sshfl [vmem:[#allocation1] sm:$0xff pattern:$0x73625140]
    %v688 = vmul.f32 %v465, %v579
    %v689 = vmul.f32 %v466, %v580
    %v690 = vmul.f32 %v467, %v581
    %v691 = vmul.f32 %v468, %v582
    %v692 = vmul.f32 %v469, %v583
    %v693 = vmul.f32 %v470, %v584
    %v694 = vmul.f32 %v471, %v585
    %v695 = vmul.f32 %v472, %v586
    %v696 = vmul.f32 %v473, %v589
    %v697 = vmul.f32 %v474, %v590
    %v698 = vmul.f32 %v475, %v591
    %v699 = vmul.f32 %v476, %v592
    %v700 = vmul.f32 %v477, %v593
    %v701 = vmul.f32 %v478, %v594
    %v702 = vmul.f32 %v479, %v595
    %v703 = vmul.f32 %v480, %v596
    %v704 = vmul.f32 %v481, %v599
    %v705 = vmul.f32 %v482, %v600
    %v706 = vmul.f32 %v483, %v601
    %v707 = vmul.f32 %v484, %v602
    %v708 = vmul.f32 %v485, %v603
    %v709 = vmul.f32 %v486, %v604
    %v710 = vmul.f32 %v487, %v605
    %v711 = vmul.f32 %v488, %v606
    %v712 = vmul.f32 %v489, %v609
    %v713 = vmul.f32 %v490, %v610
    %v714 = vmul.f32 %v491, %v611
    %v715 = vmul.f32 %v492, %v612
    %v716 = vmul.f32 %v493, %v613
    %v717 = vmul.f32 %v494, %v614
    %v718 = vmul.f32 %v495, %v615
    %v719 = vmul.f32 %v496, %v616
    %v720 = vmul.f32 %v497, %v619
    %v721 = vmul.f32 %v498, %v620
    %v722 = vmul.f32 %v499, %v621
    %v723 = vmul.f32 %v500, %v622
    %v724 = vmul.f32 %v501, %v623
    %v725 = vmul.f32 %v502, %v624
    %v726 = vmul.f32 %v503, %v625
    %v727 = vmul.f32 %v504, %v626
    %v728 = vmul.f32 %v505, %v629
    %v729 = vmul.f32 %v506, %v630
    %v730 = vmul.f32 %v507, %v631
    %v731 = vmul.f32 %v508, %v632
    %v732 = vmul.f32 %v509, %v633
    %v733 = vmul.f32 %v510, %v634
    %v734 = vmul.f32 %v511, %v635
    %v735 = vmul.f32 %v512, %v636
    %v736 = vmul.f32 %v513, %v638
    %v737 = vadd.f32 %v389, %v688
    %v738 = vadd.f32 %v390, %v689
    %v739 = vadd.f32 %v391, %v690
    %v740 = vadd.f32 %v392, %v691
    %v741 = vadd.f32 %v393, %v692
    %v742 = vadd.f32 %v394, %v693
    %v743 = vadd.f32 %v395, %v694
    %v744 = vadd.f32 %v396, %v695
    %v745 = vadd.f32 %v397, %v696
    %v746 = vadd.f32 %v398, %v697
    %v747 = vadd.f32 %v399, %v698
    %v748 = vadd.f32 %v400, %v699
    %v749 = vadd.f32 %v401, %v700
    %v750 = vadd.f32 %v402, %v701
    %v751 = vadd.f32 %v403, %v702
    %v752 = vadd.f32 %v404, %v703
    %v753 = vadd.f32 %v405, %v704
    %v754 = vadd.f32 %v406, %v705
    %v755 = vadd.f32 %v407, %v706
    %v756 = vadd.f32 %v408, %v707
    %v757 = vadd.f32 %v409, %v708
    %v758 = vadd.f32 %v410, %v709
    %v759 = vadd.f32 %v411, %v710
    %v760 = vadd.f32 %v412, %v711
    %v761 = vadd.f32 %v413, %v712
    %v762 = vadd.f32 %v414, %v713
    %v763 = vadd.f32 %v415, %v714
    %v764 = vadd.f32 %v416, %v715
    %v765 = vadd.f32 %v417, %v716
    %v766 = vadd.f32 %v418, %v717
    %v767 = vadd.f32 %v419, %v718
    %v768 = vadd.f32 %v420, %v719
    %v769 = vadd.f32 %v421, %v720
    %v770 = vadd.f32 %v422, %v721
    %v771 = vadd.f32 %v423, %v722
    %v772 = vadd.f32 %v424, %v723
    %v773 = vadd.f32 %v425, %v724
    %v774 = vadd.f32 %v426, %v725
    %v775 = vadd.f32 %v427, %v726
    %v776 = vadd.f32 %v428, %v727
    %v777 = vadd.f32 %v429, %v728
    %v778 = vadd.f32 %v430, %v729
    %v779 = vadd.f32 %v431, %v730
    %v780 = vadd.f32 %v432, %v731
    %v781 = vadd.f32 %v433, %v732
    %v782 = vadd.f32 %v434, %v733
    %v783 = vadd.f32 %v435, %v734
    %v784 = vadd.f32 %v436, %v735
    %v785 = vadd.f32 %v437, %v736
    %v786 = vld [vmem:[#allocation13] sm:$0xff]
    %v787 = vld [vmem:[#allocation13 + $0x8] sm:$0xff]
    %v788 = vld [vmem:[#allocation13 + $0x10] sm:$0xff]
    %v789 = vld [vmem:[#allocation13 + $0x18] sm:$0xff]
    %v790 = vld [vmem:[#allocation13 + $0x20] sm:$0xff]
    %v791 = vld [vmem:[#allocation13 + $0x28] sm:$0xff]
    %v792 = vld [vmem:[#allocation13 + $0x30] sm:$0x1]
    %v793 = vld [vmem:[#allocation7] sm:$0xff]
    %v794 = vld [vmem:[#allocation7 + $0x8] sm:$0xff]
    %v795 = vld [vmem:[#allocation7 + $0x10] sm:$0xff]
    %v796 = vld [vmem:[#allocation7 + $0x18] sm:$0xff]
    %v797 = vld [vmem:[#allocation7 + $0x20] sm:$0xff]
    %v798 = vld [vmem:[#allocation7 + $0x28] sm:$0xff]
    %v799 = vld [vmem:[#allocation7 + $0x30] sm:$0xff]
    %v800 = vld [vmem:[#allocation7 + $0x38] sm:$0xff]
    %v801 = vld [vmem:[#allocation7 + $0x40] sm:$0xff]
    %v802 = vld [vmem:[#allocation7 + $0x48] sm:$0xff]
    %v803 = vld [vmem:[#allocation7 + $0x50] sm:$0xff]
    %v804 = vld [vmem:[#allocation7 + $0x58] sm:$0xff]
    %v805 = vld [vmem:[#allocation7 + $0x60] sm:$0x3]
    %v813 = vperm.slane %v786, 0
    %v814 = vperm.slane %v786, 1
    %v815 = vperm.slane %v786, 2
    %v816 = vperm.slane %v786, 3
    %v817 = vperm.slane %v786, 4
    %v818 = vperm.slane %v786, 5
    %v819 = vperm.slane %v786, 6
    %v820 = vperm.slane %v786, 7
    %v821 = vperm.slane %v787, 0
    %v822 = vperm.slane %v787, 1
    %v823 = vperm.slane %v787, 2
    %v824 = vperm.slane %v787, 3
    %v825 = vperm.slane %v787, 4
    %v826 = vperm.slane %v787, 5
    %v827 = vperm.slane %v787, 6
    %v828 = vperm.slane %v787, 7
    %v829 = vperm.slane %v788, 0
    %v830 = vperm.slane %v788, 1
    %v831 = vperm.slane %v788, 2
    %v832 = vperm.slane %v788, 3
    %v833 = vperm.slane %v788, 4
    %v834 = vperm.slane %v788, 5
    %v835 = vperm.slane %v788, 6
    %v836 = vperm.slane %v788, 7
    %v837 = vperm.slane %v789, 0
    %v838 = vperm.slane %v789, 1
    %v839 = vperm.slane %v789, 2
    %v840 = vperm.slane %v789, 3
    %v841 = vperm.slane %v789, 4
    %v842 = vperm.slane %v789, 5
    %v843 = vperm.slane %v789, 6
    %v844 = vperm.slane %v789, 7
    %v845 = vperm.slane %v790, 0
    %v846 = vperm.slane %v790, 1
    %v847 = vperm.slane %v790, 2
    %v848 = vperm.slane %v790, 3
    %v849 = vperm.slane %v790, 4
    %v850 = vperm.slane %v790, 5
    %v851 = vperm.slane %v790, 6
    %v852 = vperm.slane %v790, 7
    %v853 = vperm.slane %v791, 0
    %v854 = vperm.slane %v791, 1
    %v855 = vperm.slane %v791, 2
    %v856 = vperm.slane %v791, 3
    %v857 = vperm.slane %v791, 4
    %v858 = vperm.slane %v791, 5
    %v859 = vperm.slane %v791, 6
    %v860 = vperm.slane %v791, 7
    %v861 = vperm.slane %v792, 0
    %924 = vst [vmem:[#allocation1] ss:$4 sm:$0xff] %v793
    %s925 = scalar_lea.vmem [#allocation1], 32
    %926 = vst [vmem:[%s925] ss:$4 sm:$0xff] %v794
    %v927 = vld.sshfl [vmem:[#allocation1] sm:$0xff pattern:$0x73625140]
    %v928 = vld.sshfl [vmem:[#allocation1 + $0x8] sm:$0xff pattern:$0x73625140]
    %v929 = vld.sshfl [vmem:[#allocation1 + $0x10] sm:$0xff pattern:$0x73625140]
    %v930 = vld.sshfl [vmem:[#allocation1 + $0x18] sm:$0xff pattern:$0x73625140]
    %v931 = vld.sshfl [vmem:[#allocation1 + $0x20] sm:$0xff pattern:$0x73625140]
    %v932 = vld.sshfl [vmem:[#allocation1 + $0x28] sm:$0xff pattern:$0x73625140]
    %v933 = vld.sshfl [vmem:[#allocation1 + $0x30] sm:$0xff pattern:$0x73625140]
    %v934 = vld.sshfl [vmem:[#allocation1 + $0x38] sm:$0xff pattern:$0x73625140]
    %935 = vst [vmem:[#allocation1] ss:$4 sm:$0xff] %v795
    %936 = vst [vmem:[%s925] ss:$4 sm:$0xff] %v796
    %v937 = vld.sshfl [vmem:[#allocation1] sm:$0xff pattern:$0x73625140]
    %v938 = vld.sshfl [vmem:[#allocation1 + $0x8] sm:$0xff pattern:$0x73625140]
    %v939 = vld.sshfl [vmem:[#allocation1 + $0x10] sm:$0xff pattern:$0x73625140]
    %v940 = vld.sshfl [vmem:[#allocation1 + $0x18] sm:$0xff pattern:$0x73625140]
    %v941 = vld.sshfl [vmem:[#allocation1 + $0x20] sm:$0xff pattern:$0x73625140]
    %v942 = vld.sshfl [vmem:[#allocation1 + $0x28] sm:$0xff pattern:$0x73625140]
    %v943 = vld.sshfl [vmem:[#allocation1 + $0x30] sm:$0xff pattern:$0x73625140]
    %v944 = vld.sshfl [vmem:[#allocation1 + $0x38] sm:$0xff pattern:$0x73625140]
    %945 = vst [vmem:[#allocation1] ss:$4 sm:$0xff] %v797
    %946 = vst [vmem:[%s925] ss:$4 sm:$0xff] %v798
    %v947 = vld.sshfl [vmem:[#allocation1] sm:$0xff pattern:$0x73625140]
    %v948 = vld.sshfl [vmem:[#allocation1 + $0x8] sm:$0xff pattern:$0x73625140]
    %v949 = vld.sshfl [vmem:[#allocation1 + $0x10] sm:$0xff pattern:$0x73625140]
    %v950 = vld.sshfl [vmem:[#allocation1 + $0x18] sm:$0xff pattern:$0x73625140]
    %v951 = vld.sshfl [vmem:[#allocation1 + $0x20] sm:$0xff pattern:$0x73625140]
    %v952 = vld.sshfl [vmem:[#allocation1 + $0x28] sm:$0xff pattern:$0x73625140]
    %v953 = vld.sshfl [vmem:[#allocation1 + $0x30] sm:$0xff pattern:$0x73625140]
    %v954 = vld.sshfl [vmem:[#allocation1 + $0x38] sm:$0xff pattern:$0x73625140]
    %955 = vst [vmem:[#allocation1] ss:$4 sm:$0xff] %v799
    %956 = vst [vmem:[%s925] ss:$4 sm:$0xff] %v800
    %v957 = vld.sshfl [vmem:[#allocation1] sm:$0xff pattern:$0x73625140]
    %v958 = vld.sshfl [vmem:[#allocation1 + $0x8] sm:$0xff pattern:$0x73625140]
    %v959 = vld.sshfl [vmem:[#allocation1 + $0x10] sm:$0xff pattern:$0x73625140]
    %v960 = vld.sshfl [vmem:[#allocation1 + $0x18] sm:$0xff pattern:$0x73625140]
    %v961 = vld.sshfl [vmem:[#allocation1 + $0x20] sm:$0xff pattern:$0x73625140]
    %v962 = vld.sshfl [vmem:[#allocation1 + $0x28] sm:$0xff pattern:$0x73625140]
    %v963 = vld.sshfl [vmem:[#allocation1 + $0x30] sm:$0xff pattern:$0x73625140]
    %v964 = vld.sshfl [vmem:[#allocation1 + $0x38] sm:$0xff pattern:$0x73625140]
    %965 = vst [vmem:[#allocation1] ss:$4 sm:$0xff] %v801
    %966 = vst [vmem:[%s925] ss:$4 sm:$0xff] %v802
    %v967 = vld.sshfl [vmem:[#allocation1] sm:$0xff pattern:$0x73625140]
    %v968 = vld.sshfl [vmem:[#allocation1 + $0x8] sm:$0xff pattern:$0x73625140]
    %v969 = vld.sshfl [vmem:[#allocation1 + $0x10] sm:$0xff pattern:$0x73625140]
    %v970 = vld.sshfl [vmem:[#allocation1 + $0x18] sm:$0xff pattern:$0x73625140]
    %v971 = vld.sshfl [vmem:[#allocation1 + $0x20] sm:$0xff pattern:$0x73625140]
    %v972 = vld.sshfl [vmem:[#allocation1 + $0x28] sm:$0xff pattern:$0x73625140]
    %v973 = vld.sshfl [vmem:[#allocation1 + $0x30] sm:$0xff pattern:$0x73625140]
    %v974 = vld.sshfl [vmem:[#allocation1 + $0x38] sm:$0xff pattern:$0x73625140]
    %975 = vst [vmem:[#allocation1] ss:$4 sm:$0xff] %v803
    %976 = vst [vmem:[%s925] ss:$4 sm:$0xff] %v804
    %v977 = vld.sshfl [vmem:[#allocation1] sm:$0xff pattern:$0x73625140]
    %v978 = vld.sshfl [vmem:[#allocation1 + $0x8] sm:$0xff pattern:$0x73625140]
    %v979 = vld.sshfl [vmem:[#allocation1 + $0x10] sm:$0xff pattern:$0x73625140]
    %v980 = vld.sshfl [vmem:[#allocation1 + $0x18] sm:$0xff pattern:$0x73625140]
    %v981 = vld.sshfl [vmem:[#allocation1 + $0x20] sm:$0xff pattern:$0x73625140]
    %v982 = vld.sshfl [vmem:[#allocation1 + $0x28] sm:$0xff pattern:$0x73625140]
    %v983 = vld.sshfl [vmem:[#allocation1 + $0x30] sm:$0xff pattern:$0x73625140]
    %v984 = vld.sshfl [vmem:[#allocation1 + $0x38] sm:$0xff pattern:$0x73625140]
    %985 = vst [vmem:[#allocation1] ss:$4 sm:$0xff] %v805
    %v986 = vld.sshfl [vmem:[#allocation1] sm:$0xff pattern:$0x73625140]
    %v1036 = vmul.f32 %v813, %v927
    %v1037 = vmul.f32 %v814, %v928
    %v1038 = vmul.f32 %v815, %v929
    %v1039 = vmul.f32 %v816, %v930
    %v1040 = vmul.f32 %v817, %v931
    %v1041 = vmul.f32 %v818, %v932
    %v1042 = vmul.f32 %v819, %v933
    %v1043 = vmul.f32 %v820, %v934
    %v1044 = vmul.f32 %v821, %v937
    %v1045 = vmul.f32 %v822, %v938
    %v1046 = vmul.f32 %v823, %v939
    %v1047 = vmul.f32 %v824, %v940
    %v1048 = vmul.f32 %v825, %v941
    %v1049 = vmul.f32 %v826, %v942
    %v1050 = vmul.f32 %v827, %v943
    %v1051 = vmul.f32 %v828, %v944
    %v1052 = vmul.f32 %v829, %v947
    %v1053 = vmul.f32 %v830, %v948
    %v1054 = vmul.f32 %v831, %v949
    %v1055 = vmul.f32 %v832, %v950
    %v1056 = vmul.f32 %v833, %v951
    %v1057 = vmul.f32 %v834, %v952
    %v1058 = vmul.f32 %v835, %v953
    %v1059 = vmul.f32 %v836, %v954
    %v1060 = vmul.f32 %v837, %v957
    %v1061 = vmul.f32 %v838, %v958
    %v1062 = vmul.f32 %v839, %v959
    %v1063 = vmul.f32 %v840, %v960
    %v1064 = vmul.f32 %v841, %v961
    %v1065 = vmul.f32 %v842, %v962
    %v1066 = vmul.f32 %v843, %v963
    %v1067 = vmul.f32 %v844, %v964
    %v1068 = vmul.f32 %v845, %v967
    %v1069 = vmul.f32 %v846, %v968
    %v1070 = vmul.f32 %v847, %v969
    %v1071 = vmul.f32 %v848, %v970
    %v1072 = vmul.f32 %v849, %v971
    %v1073 = vmul.f32 %v850, %v972
    %v1074 = vmul.f32 %v851, %v973
    %v1075 = vmul.f32 %v852, %v974
    %v1076 = vmul.f32 %v853, %v977
    %v1077 = vmul.f32 %v854, %v978
    %v1078 = vmul.f32 %v855, %v979
    %v1079 = vmul.f32 %v856, %v980
    %v1080 = vmul.f32 %v857, %v981
    %v1081 = vmul.f32 %v858, %v982
    %v1082 = vmul.f32 %v859, %v983
    %v1083 = vmul.f32 %v860, %v984
    %v1084 = vmul.f32 %v861, %v986
    %v1085 = vadd.f32 %v737, %v1036
    %v1086 = vadd.f32 %v738, %v1037
    %v1087 = vadd.f32 %v739, %v1038
    %v1088 = vadd.f32 %v740, %v1039
    %v1089 = vadd.f32 %v741, %v1040
    %v1090 = vadd.f32 %v742, %v1041
    %v1091 = vadd.f32 %v743, %v1042
    %v1092 = vadd.f32 %v744, %v1043
    %v1093 = vadd.f32 %v745, %v1044
    %v1094 = vadd.f32 %v746, %v1045
    %v1095 = vadd.f32 %v747, %v1046
    %v1096 = vadd.f32 %v748, %v1047
    %v1097 = vadd.f32 %v749, %v1048
    %v1098 = vadd.f32 %v750, %v1049
    %v1099 = vadd.f32 %v751, %v1050
    %v1100 = vadd.f32 %v752, %v1051
    %v1101 = vadd.f32 %v753, %v1052
    %v1102 = vadd.f32 %v754, %v1053
    %v1103 = vadd.f32 %v755, %v1054
    %v1104 = vadd.f32 %v756, %v1055
    %v1105 = vadd.f32 %v757, %v1056
    %v1106 = vadd.f32 %v758, %v1057
    %v1107 = vadd.f32 %v759, %v1058
    %v1108 = vadd.f32 %v760, %v1059
    %v1109 = vadd.f32 %v761, %v1060
    %v1110 = vadd.f32 %v762, %v1061
    %v1111 = vadd.f32 %v763, %v1062
    %v1112 = vadd.f32 %v764, %v1063
    %v1113 = vadd.f32 %v765, %v1064
    %v1114 = vadd.f32 %v766, %v1065
    %v1115 = vadd.f32 %v767, %v1066
    %v1116 = vadd.f32 %v768, %v1067
    %v1117 = vadd.f32 %v769, %v1068
    %v1118 = vadd.f32 %v770, %v1069
    %v1119 = vadd.f32 %v771, %v1070
    %v1120 = vadd.f32 %v772, %v1071
    %v1121 = vadd.f32 %v773, %v1072
    %v1122 = vadd.f32 %v774, %v1073
    %v1123 = vadd.f32 %v775, %v1074
    %v1124 = vadd.f32 %v776, %v1075
    %v1125 = vadd.f32 %v777, %v1076
    %v1126 = vadd.f32 %v778, %v1077
    %v1127 = vadd.f32 %v779, %v1078
    %v1128 = vadd.f32 %v780, %v1079
    %v1129 = vadd.f32 %v781, %v1080
    %v1130 = vadd.f32 %v782, %v1081
    %v1131 = vadd.f32 %v783, %v1082
    %v1132 = vadd.f32 %v784, %v1083
    %v1133 = vadd.f32 %v785, %v1084
    %v1134 = vld [vmem:[#allocation14] sm:$0xff]
    %v1135 = vld [vmem:[#allocation14 + $0x8] sm:$0xff]
    %v1136 = vld [vmem:[#allocation14 + $0x10] sm:$0xff]
    %v1137 = vld [vmem:[#allocation14 + $0x18] sm:$0xff]
    %v1138 = vld [vmem:[#allocation14 + $0x20] sm:$0xff]
    %v1139 = vld [vmem:[#allocation14 + $0x28] sm:$0xff]
    %v1140 = vld [vmem:[#allocation14 + $0x30] sm:$0x1]
    %v1141 = vld [vmem:[#allocation8] sm:$0xff]
    %v1142 = vld [vmem:[#allocation8 + $0x8] sm:$0xff]
    %v1143 = vld [vmem:[#allocation8 + $0x10] sm:$0xff]
    %v1144 = vld [vmem:[#allocation8 + $0x18] sm:$0xff]
    %v1145 = vld [vmem:[#allocation8 + $0x20] sm:$0xff]
    %v1146 = vld [vmem:[#allocation8 + $0x28] sm:$0xff]
    %v1147 = vld [vmem:[#allocation8 + $0x30] sm:$0xff]
    %v1148 = vld [vmem:[#allocation8 + $0x38] sm:$0xff]
    %v1149 = vld [vmem:[#allocation8 + $0x40] sm:$0xff]
    %v1150 = vld [vmem:[#allocation8 + $0x48] sm:$0xff]
    %v1151 = vld [vmem:[#allocation8 + $0x50] sm:$0xff]
    %v1152 = vld [vmem:[#allocation8 + $0x58] sm:$0xff]
    %v1153 = vld [vmem:[#allocation8 + $0x60] sm:$0x3]
    %v1161 = vperm.slane %v1134, 0
    %v1162 = vperm.slane %v1134, 1
    %v1163 = vperm.slane %v1134, 2
    %v1164 = vperm.slane %v1134, 3
    %v1165 = vperm.slane %v1134, 4
    %v1166 = vperm.slane %v1134, 5
    %v1167 = vperm.slane %v1134, 6
    %v1168 = vperm.slane %v1134, 7
    %v1169 = vperm.slane %v1135, 0
    %v1170 = vperm.slane %v1135, 1
    %v1171 = vperm.slane %v1135, 2
    %v1172 = vperm.slane %v1135, 3
    %v1173 = vperm.slane %v1135, 4
    %v1174 = vperm.slane %v1135, 5
    %v1175 = vperm.slane %v1135, 6
    %v1176 = vperm.slane %v1135, 7
    %v1177 = vperm.slane %v1136, 0
    %v1178 = vperm.slane %v1136, 1
    %v1179 = vperm.slane %v1136, 2
    %v1180 = vperm.slane %v1136, 3
    %v1181 = vperm.slane %v1136, 4
    %v1182 = vperm.slane %v1136, 5
    %v1183 = vperm.slane %v1136, 6
    %v1184 = vperm.slane %v1136, 7
    %v1185 = vperm.slane %v1137, 0
    %v1186 = vperm.slane %v1137, 1
    %v1187 = vperm.slane %v1137, 2
    %v1188 = vperm.slane %v1137, 3
    %v1189 = vperm.slane %v1137, 4
    %v1190 = vperm.slane %v1137, 5
    %v1191 = vperm.slane %v1137, 6
    %v1192 = vperm.slane %v1137, 7
    %v1193 = vperm.slane %v1138, 0
    %v1194 = vperm.slane %v1138, 1
    %v1195 = vperm.slane %v1138, 2
    %v1196 = vperm.slane %v1138, 3
    %v1197 = vperm.slane %v1138, 4
    %v1198 = vperm.slane %v1138, 5
    %v1199 = vperm.slane %v1138, 6
    %v1200 = vperm.slane %v1138, 7
    %v1201 = vperm.slane %v1139, 0
    %v1202 = vperm.slane %v1139, 1
    %v1203 = vperm.slane %v1139, 2
    %v1204 = vperm.slane %v1139, 3
    %v1205 = vperm.slane %v1139, 4
    %v1206 = vperm.slane %v1139, 5
    %v1207 = vperm.slane %v1139, 6
    %v1208 = vperm.slane %v1139, 7
    %v1209 = vperm.slane %v1140, 0
    %1272 = vst [vmem:[#allocation1] ss:$4 sm:$0xff] %v1141
    %s1273 = scalar_lea.vmem [#allocation1], 32
    %1274 = vst [vmem:[%s1273] ss:$4 sm:$0xff] %v1142
    %v1275 = vld.sshfl [vmem:[#allocation1] sm:$0xff pattern:$0x73625140]
    %v1276 = vld.sshfl [vmem:[#allocation1 + $0x8] sm:$0xff pattern:$0x73625140]
    %v1277 = vld.sshfl [vmem:[#allocation1 + $0x10] sm:$0xff pattern:$0x73625140]
    %v1278 = vld.sshfl [vmem:[#allocation1 + $0x18] sm:$0xff pattern:$0x73625140]
    %v1279 = vld.sshfl [vmem:[#allocation1 + $0x20] sm:$0xff pattern:$0x73625140]
    %v1280 = vld.sshfl [vmem:[#allocation1 + $0x28] sm:$0xff pattern:$0x73625140]
    %v1281 = vld.sshfl [vmem:[#allocation1 + $0x30] sm:$0xff pattern:$0x73625140]
    %v1282 = vld.sshfl [vmem:[#allocation1 + $0x38] sm:$0xff pattern:$0x73625140]
    %1283 = vst [vmem:[#allocation1] ss:$4 sm:$0xff] %v1143
    %1284 = vst [vmem:[%s1273] ss:$4 sm:$0xff] %v1144
    %v1285 = vld.sshfl [vmem:[#allocation1] sm:$0xff pattern:$0x73625140]
    %v1286 = vld.sshfl [vmem:[#allocation1 + $0x8] sm:$0xff pattern:$0x73625140]
    %v1287 = vld.sshfl [vmem:[#allocation1 + $0x10] sm:$0xff pattern:$0x73625140]
    %v1288 = vld.sshfl [vmem:[#allocation1 + $0x18] sm:$0xff pattern:$0x73625140]
    %v1289 = vld.sshfl [vmem:[#allocation1 + $0x20] sm:$0xff pattern:$0x73625140]
    %v1290 = vld.sshfl [vmem:[#allocation1 + $0x28] sm:$0xff pattern:$0x73625140]
    %v1291 = vld.sshfl [vmem:[#allocation1 + $0x30] sm:$0xff pattern:$0x73625140]
    %v1292 = vld.sshfl [vmem:[#allocation1 + $0x38] sm:$0xff pattern:$0x73625140]
    %1293 = vst [vmem:[#allocation1] ss:$4 sm:$0xff] %v1145
    %1294 = vst [vmem:[%s1273] ss:$4 sm:$0xff] %v1146
    %v1295 = vld.sshfl [vmem:[#allocation1] sm:$0xff pattern:$0x73625140]
    %v1296 = vld.sshfl [vmem:[#allocation1 + $0x8] sm:$0xff pattern:$0x73625140]
    %v1297 = vld.sshfl [vmem:[#allocation1 + $0x10] sm:$0xff pattern:$0x73625140]
    %v1298 = vld.sshfl [vmem:[#allocation1 + $0x18] sm:$0xff pattern:$0x73625140]
    %v1299 = vld.sshfl [vmem:[#allocation1 + $0x20] sm:$0xff pattern:$0x73625140]
    %v1300 = vld.sshfl [vmem:[#allocation1 + $0x28] sm:$0xff pattern:$0x73625140]
    %v1301 = vld.sshfl [vmem:[#allocation1 + $0x30] sm:$0xff pattern:$0x73625140]
    %v1302 = vld.sshfl [vmem:[#allocation1 + $0x38] sm:$0xff pattern:$0x73625140]
    %1303 = vst [vmem:[#allocation1] ss:$4 sm:$0xff] %v1147
    %1304 = vst [vmem:[%s1273] ss:$4 sm:$0xff] %v1148
    %v1305 = vld.sshfl [vmem:[#allocation1] sm:$0xff pattern:$0x73625140]
    %v1306 = vld.sshfl [vmem:[#allocation1 + $0x8] sm:$0xff pattern:$0x73625140]
    %v1307 = vld.sshfl [vmem:[#allocation1 + $0x10] sm:$0xff pattern:$0x73625140]
    %v1308 = vld.sshfl [vmem:[#allocation1 + $0x18] sm:$0xff pattern:$0x73625140]
    %v1309 = vld.sshfl [vmem:[#allocation1 + $0x20] sm:$0xff pattern:$0x73625140]
    %v1310 = vld.sshfl [vmem:[#allocation1 + $0x28] sm:$0xff pattern:$0x73625140]
    %v1311 = vld.sshfl [vmem:[#allocation1 + $0x30] sm:$0xff pattern:$0x73625140]
    %v1312 = vld.sshfl [vmem:[#allocation1 + $0x38] sm:$0xff pattern:$0x73625140]
    %1313 = vst [vmem:[#allocation1] ss:$4 sm:$0xff] %v1149
    %1314 = vst [vmem:[%s1273] ss:$4 sm:$0xff] %v1150
    %v1315 = vld.sshfl [vmem:[#allocation1] sm:$0xff pattern:$0x73625140]
    %v1316 = vld.sshfl [vmem:[#allocation1 + $0x8] sm:$0xff pattern:$0x73625140]
    %v1317 = vld.sshfl [vmem:[#allocation1 + $0x10] sm:$0xff pattern:$0x73625140]
    %v1318 = vld.sshfl [vmem:[#allocation1 + $0x18] sm:$0xff pattern:$0x73625140]
    %v1319 = vld.sshfl [vmem:[#allocation1 + $0x20] sm:$0xff pattern:$0x73625140]
    %v1320 = vld.sshfl [vmem:[#allocation1 + $0x28] sm:$0xff pattern:$0x73625140]
    %v1321 = vld.sshfl [vmem:[#allocation1 + $0x30] sm:$0xff pattern:$0x73625140]
    %v1322 = vld.sshfl [vmem:[#allocation1 + $0x38] sm:$0xff pattern:$0x73625140]
    %1323 = vst [vmem:[#allocation1] ss:$4 sm:$0xff] %v1151
    %1324 = vst [vmem:[%s1273] ss:$4 sm:$0xff] %v1152
    %v1325 = vld.sshfl [vmem:[#allocation1] sm:$0xff pattern:$0x73625140]
    %v1326 = vld.sshfl [vmem:[#allocation1 + $0x8] sm:$0xff pattern:$0x73625140]
    %v1327 = vld.sshfl [vmem:[#allocation1 + $0x10] sm:$0xff pattern:$0x73625140]
    %v1328 = vld.sshfl [vmem:[#allocation1 + $0x18] sm:$0xff pattern:$0x73625140]
    %v1329 = vld.sshfl [vmem:[#allocation1 + $0x20] sm:$0xff pattern:$0x73625140]
    %v1330 = vld.sshfl [vmem:[#allocation1 + $0x28] sm:$0xff pattern:$0x73625140]
    %v1331 = vld.sshfl [vmem:[#allocation1 + $0x30] sm:$0xff pattern:$0x73625140]
    %v1332 = vld.sshfl [vmem:[#allocation1 + $0x38] sm:$0xff pattern:$0x73625140]
    %1333 = vst [vmem:[#allocation1] ss:$4 sm:$0xff] %v1153
    %v1334 = vld.sshfl [vmem:[#allocation1] sm:$0xff pattern:$0x73625140]
    %v1384 = vmul.f32 %v1161, %v1275
    %v1385 = vmul.f32 %v1162, %v1276
    %v1386 = vmul.f32 %v1163, %v1277
    %v1387 = vmul.f32 %v1164, %v1278
    %v1388 = vmul.f32 %v1165, %v1279
    %v1389 = vmul.f32 %v1166, %v1280
    %v1390 = vmul.f32 %v1167, %v1281
    %v1391 = vmul.f32 %v1168, %v1282
    %v1392 = vmul.f32 %v1169, %v1285
    %v1393 = vmul.f32 %v1170, %v1286
    %v1394 = vmul.f32 %v1171, %v1287
    %v1395 = vmul.f32 %v1172, %v1288
    %v1396 = vmul.f32 %v1173, %v1289
    %v1397 = vmul.f32 %v1174, %v1290
    %v1398 = vmul.f32 %v1175, %v1291
    %v1399 = vmul.f32 %v1176, %v1292
    %v1400 = vmul.f32 %v1177, %v1295
    %v1401 = vmul.f32 %v1178, %v1296
    %v1402 = vmul.f32 %v1179, %v1297
    %v1403 = vmul.f32 %v1180, %v1298
    %v1404 = vmul.f32 %v1181, %v1299
    %v1405 = vmul.f32 %v1182, %v1300
    %v1406 = vmul.f32 %v1183, %v1301
    %v1407 = vmul.f32 %v1184, %v1302
    %v1408 = vmul.f32 %v1185, %v1305
    %v1409 = vmul.f32 %v1186, %v1306
    %v1410 = vmul.f32 %v1187, %v1307
    %v1411 = vmul.f32 %v1188, %v1308
    %v1412 = vmul.f32 %v1189, %v1309
    %v1413 = vmul.f32 %v1190, %v1310
    %v1414 = vmul.f32 %v1191, %v1311
    %v1415 = vmul.f32 %v1192, %v1312
    %v1416 = vmul.f32 %v1193, %v1315
    %v1417 = vmul.f32 %v1194, %v1316
    %v1418 = vmul.f32 %v1195, %v1317
    %v1419 = vmul.f32 %v1196, %v1318
    %v1420 = vmul.f32 %v1197, %v1319
    %v1421 = vmul.f32 %v1198, %v1320
    %v1422 = vmul.f32 %v1199, %v1321
    %v1423 = vmul.f32 %v1200, %v1322
    %v1424 = vmul.f32 %v1201, %v1325
    %v1425 = vmul.f32 %v1202, %v1326
    %v1426 = vmul.f32 %v1203, %v1327
    %v1427 = vmul.f32 %v1204, %v1328
    %v1428 = vmul.f32 %v1205, %v1329
    %v1429 = vmul.f32 %v1206, %v1330
    %v1430 = vmul.f32 %v1207, %v1331
    %v1431 = vmul.f32 %v1208, %v1332
    %v1432 = vmul.f32 %v1209, %v1334
    %v1433 = vadd.f32 %v1085, %v1384
    %v1434 = vadd.f32 %v1086, %v1385
    %v1435 = vadd.f32 %v1087, %v1386
    %v1436 = vadd.f32 %v1088, %v1387
    %v1437 = vadd.f32 %v1089, %v1388
    %v1438 = vadd.f32 %v1090, %v1389
    %v1439 = vadd.f32 %v1091, %v1390
    %v1440 = vadd.f32 %v1092, %v1391
    %v1441 = vadd.f32 %v1093, %v1392
    %v1442 = vadd.f32 %v1094, %v1393
    %v1443 = vadd.f32 %v1095, %v1394
    %v1444 = vadd.f32 %v1096, %v1395
    %v1445 = vadd.f32 %v1097, %v1396
    %v1446 = vadd.f32 %v1098, %v1397
    %v1447 = vadd.f32 %v1099, %v1398
    %v1448 = vadd.f32 %v1100, %v1399
    %v1449 = vadd.f32 %v1101, %v1400
    %v1450 = vadd.f32 %v1102, %v1401
    %v1451 = vadd.f32 %v1103, %v1402
    %v1452 = vadd.f32 %v1104, %v1403
    %v1453 = vadd.f32 %v1105, %v1404
    %v1454 = vadd.f32 %v1106, %v1405
    %v1455 = vadd.f32 %v1107, %v1406
    %v1456 = vadd.f32 %v1108, %v1407
    %v1457 = vadd.f32 %v1109, %v1408
    %v1458 = vadd.f32 %v1110, %v1409
    %v1459 = vadd.f32 %v1111, %v1410
    %v1460 = vadd.f32 %v1112, %v1411
    %v1461 = vadd.f32 %v1113, %v1412
    %v1462 = vadd.f32 %v1114, %v1413
    %v1463 = vadd.f32 %v1115, %v1414
    %v1464 = vadd.f32 %v1116, %v1415
    %v1465 = vadd.f32 %v1117, %v1416
    %v1466 = vadd.f32 %v1118, %v1417
    %v1467 = vadd.f32 %v1119, %v1418
    %v1468 = vadd.f32 %v1120, %v1419
    %v1469 = vadd.f32 %v1121, %v1420
    %v1470 = vadd.f32 %v1122, %v1421
    %v1471 = vadd.f32 %v1123, %v1422
    %v1472 = vadd.f32 %v1124, %v1423
    %v1473 = vadd.f32 %v1125, %v1424
    %v1474 = vadd.f32 %v1126, %v1425
    %v1475 = vadd.f32 %v1127, %v1426
    %v1476 = vadd.f32 %v1128, %v1427
    %v1477 = vadd.f32 %v1129, %v1428
    %v1478 = vadd.f32 %v1130, %v1429
    %v1479 = vadd.f32 %v1131, %v1430
    %v1480 = vadd.f32 %v1132, %v1431
    %v1481 = vadd.f32 %v1133, %v1432
    %v1530 = vrot.slane %v1434, 6
    %v1531 = vrot.slane %v1435, 4
    %v1532 = vrot.slane %v1436, 2
    %v1533 = vrot.slane %v1438, 6
    %v1534 = vrot.slane %v1439, 4
    %v1535 = vrot.slane %v1440, 2
    %v1536 = vrot.slane %v1442, 6
    %v1537 = vrot.slane %v1443, 4
    %v1538 = vrot.slane %v1444, 2
    %v1539 = vrot.slane %v1446, 6
    %v1540 = vrot.slane %v1447, 4
    %v1541 = vrot.slane %v1448, 2
    %v1542 = vrot.slane %v1450, 6
    %v1543 = vrot.slane %v1451, 4
    %v1544 = vrot.slane %v1452, 2
    %v1545 = vrot.slane %v1454, 6
    %v1546 = vrot.slane %v1455, 4
    %v1547 = vrot.slane %v1456, 2
    %v1548 = vrot.slane %v1458, 6
    %v1549 = vrot.slane %v1459, 4
    %v1550 = vrot.slane %v1460, 2
    %v1551 = vrot.slane %v1462, 6
    %v1552 = vrot.slane %v1463, 4
    %v1553 = vrot.slane %v1464, 2
    %v1554 = vrot.slane %v1466, 6
    %v1555 = vrot.slane %v1467, 4
    %v1556 = vrot.slane %v1468, 2
    %v1557 = vrot.slane %v1470, 6
    %v1558 = vrot.slane %v1471, 4
    %v1559 = vrot.slane %v1472, 2
    %v1560 = vrot.slane %v1474, 6
    %v1561 = vrot.slane %v1475, 4
    %v1562 = vrot.slane %v1476, 2
    %v1563 = vrot.slane %v1478, 6
    %v1564 = vrot.slane %v1479, 4
    %v1565 = vrot.slane %v1480, 2
    %vm1566 = vcmask 1041408
    %v1567 = vsel %vm1566, %v1433, %v1530
    %vm1568 = vcmask 1045508
    %v1569 = vsel %vm1568, %v1531, %v1532
    %vm1570 = vcmask 1043456
    %v1571 = vsel %vm1570, %v1567, %v1569
    %v1572 = vsel %vm1566, %v1437, %v1533
    %v1573 = vsel %vm1568, %v1534, %v1535
    %v1574 = vsel %vm1570, %v1572, %v1573
    %v1575 = vsel %vm1566, %v1441, %v1536
    %v1576 = vsel %vm1568, %v1537, %v1538
    %v1577 = vsel %vm1570, %v1575, %v1576
    %v1578 = vsel %vm1566, %v1445, %v1539
    %v1579 = vsel %vm1568, %v1540, %v1541
    %v1580 = vsel %vm1570, %v1578, %v1579
    %v1581 = vsel %vm1566, %v1449, %v1542
    %v1582 = vsel %vm1568, %v1543, %v1544
    %v1583 = vsel %vm1570, %v1581, %v1582
    %v1584 = vsel %vm1566, %v1453, %v1545
    %v1585 = vsel %vm1568, %v1546, %v1547
    %v1586 = vsel %vm1570, %v1584, %v1585
    %v1587 = vsel %vm1566, %v1457, %v1548
    %v1588 = vsel %vm1568, %v1549, %v1550
    %v1589 = vsel %vm1570, %v1587, %v1588
    %v1590 = vsel %vm1566, %v1461, %v1551
    %v1591 = vsel %vm1568, %v1552, %v1553
    %v1592 = vsel %vm1570, %v1590, %v1591
    %v1593 = vsel %vm1566, %v1465, %v1554
    %v1594 = vsel %vm1568, %v1555, %v1556
    %v1595 = vsel %vm1570, %v1593, %v1594
    %v1596 = vsel %vm1566, %v1469, %v1557
    %v1597 = vsel %vm1568, %v1558, %v1559
    %v1598 = vsel %vm1570, %v1596, %v1597
    %v1599 = vsel %vm1566, %v1473, %v1560
    %v1600 = vsel %vm1568, %v1561, %v1562
    %v1601 = vsel %vm1570, %v1599, %v1600
    %v1602 = vsel %vm1566, %v1477, %v1563
    %v1603 = vsel %vm1568, %v1564, %v1565
    %v1604 = vsel %vm1570, %v1602, %v1603
    %1617 = vst [vmem:[#allocation16] sm:$0xff] %v1571
    %1618 = vst [vmem:[#allocation16 + $0x8] sm:$0xff] %v1574
    %1619 = vst [vmem:[#allocation16 + $0x10] sm:$0xff] %v1577
    %1620 = vst [vmem:[#allocation16 + $0x18] sm:$0xff] %v1580
    %1621 = vst [vmem:[#allocation16 + $0x20] sm:$0xff] %v1583
    %1622 = vst [vmem:[#allocation16 + $0x28] sm:$0xff] %v1586
    %1623 = vst [vmem:[#allocation16 + $0x30] sm:$0xff] %v1589
    %1624 = vst [vmem:[#allocation16 + $0x38] sm:$0xff] %v1592
    %1625 = vst [vmem:[#allocation16 + $0x40] sm:$0xff] %v1595
    %1626 = vst [vmem:[#allocation16 + $0x48] sm:$0xff] %v1598
    %1627 = vst [vmem:[#allocation16 + $0x50] sm:$0xff] %v1601
    %1628 = vst [vmem:[#allocation16 + $0x58] sm:$0xff] %v1604
    %1629 = vst [vmem:[#allocation16 + $0x60] sm:$0x3] %v1481
    // Predicated region
    $region66: #{tpu_custom_call.1} parent=1 // pred_check
      _
    $region67: #{tpu_custom_call.1} parent=1 // pred_check_branch
      %1631 = sbr.rel (0) target = $region69
    $region68: #{tpu_custom_call.1} parent=1 // pred_region
      %1633 = vsyncadd [#allocation4], 0
      %s1635 = sshll.u32 [#allocation16], 4
      %s1636 = int_to_ptr.vmem [resolvable:$true] %s1635
      %s1637 = sshll.u32 %s8, 4
      %s1638 = int_to_ptr.hbm [resolvable:$true] %s1637
      %1640 = dma.vmem_to_hbm [thread:$0]  %s1636, 1568, %s1638, [#allocation4]
    $region69: #{tpu_custom_call.1} parent=1 // pred_fallthru
      _
    // Predicated region
    $region70: #{tpu_custom_call.1} parent=1 // pred_check
      _
    $region71: #{tpu_custom_call.1} parent=1 // pred_check_branch
      %1642 = sbr.rel (0) target = $region73
    $region72: #{tpu_custom_call.1} parent=1 // pred_region
      %1644 = dma.done [#allocation4], 1568
    $region73: #{tpu_custom_call.1} parent=1 // pred_fallthru
      _
    %1645 = vsyncpa [#allocation3], 1
    %1646 = vsyncpa [#allocation6], 1
    %1647 = vsyncpa [#allocation9], 1
    %1648 = vsyncpa [#allocation12], 1
    %1649 = vsyncpa [#allocation15], 1
    %1650 = vsyncpa [#allocation4], 1

</llo_original>
